<compile_context>
chip_gen: v5e
topology: v5e:2x2
jax: 0.10.0
libtpu: 0.0.40
codegen_flags: <defaults>
</compile_context>

<pallas_src>
import jax
import jax.numpy as jnp
from jax.experimental import pallas as pl
from jax.experimental.pallas import tpu as pltpu

IN_FEATURES = 64
OUT_FEATURES = 2

PACK = 2                                # original rows folded into one 128-lane row
PACKED_IN = PACK * IN_FEATURES          # 128
PACKED_OUT = PACK * OUT_FEATURES        # 4

TILE_PACKED = 8192                      # packed rows / grid step -> 4 MiB f32 x-block
MIN_SPLIT_PACKED = 1024                 # below this, one full-extent block


def linear_kernel(x_ref, w_ref, b_ref, o_ref):
    # x_ref: (T, 128)  two original rows per packed row
    # w_ref: (128, 4)  block-diagonal [[Wt, 0], [0, Wt]]
    # b_ref: (1, 4)    [bias, bias]
    # o_ref: (T, 4)
    acc = jnp.dot(x_ref[...], w_ref[...], preferred_element_type=jnp.float32)
    o_ref[...] = (acc + b_ref[...]).astype(o_ref.dtype)


def mlp_forward(x, weight, bias):
    """y = x @ weight.T + bias.  x: (B, 64); weight: (2, 64); bias: (2,)."""
    B = x.shape[0]
    dtype = x.dtype

    # Odd batch: pad one zero row so the 2-row packing is a pure reshape.  The
    # padded half-row only produces output columns that are sliced away below.
    # Even B (common case) takes the zero-copy path; this is the only copy.
    B_work = B + (B % PACK)
    if B_work != B:
        x = jnp.pad(x, ((0, B_work - B), (0, 0)))

    P = B_work // PACK                        # packed rows
    x_packed = x.reshape(P, PACKED_IN)        # row-major view: free for even B

    # Tile selection (packed rows per grid step):
    #   large B : 8192-row (4 MiB) blocks, grid possibly ragged at the edge.
    #   medium B: exactly 2 blocks (v7x 2-TC sharding + DMA/compute overlap).
    #   small B : one full-extent block.
    if P >= 2 * TILE_PACKED:
        tile = TILE_PACKED
    elif P >= MIN_SPLIT_PACKED:
        tile = ((pl.cdiv(P, 2) + 7) // 8) * 8     # ~half of P, sublane(8) aligned
    else:
        tile = P
    grid = (pl.cdiv(P, tile),)                    # last block may be partial;
                                                  # Pallas masks the ragged edge.

    # Block-diagonal weight / tiled bias so the 2-row packing preserves the math.
    wt = weight.T.astype(dtype)                                   # (64, 2)
    zeros = jnp.zeros_like(wt)
    w_packed = jnp.concatenate(
        [jnp.concatenate([wt, zeros], axis=1),
         jnp.concatenate([zeros, wt], axis=1)], axis=0)           # (128, 4)
    b_packed = jnp.tile(bias.astype(dtype).reshape(1, OUT_FEATURES),
                        (1, PACK))                                # (1, 4)

    out_packed = pl.pallas_call(
        linear_kernel,
        out_shape=jax.ShapeDtypeStruct((P, PACKED_OUT), dtype),
        grid_spec=pltpu.PrefetchScalarGridSpec(
            num_scalar_prefetch=0,
            grid=grid,
            in_specs=[
                pl.BlockSpec((tile, PACKED_IN), lambda i: (i, 0)),
                pl.BlockSpec((PACKED_IN, PACKED_OUT), lambda i: (0, 0)),
                pl.BlockSpec((1, PACKED_OUT), lambda i: (0, 0)),
            ],
            out_specs=pl.BlockSpec((tile, PACKED_OUT), lambda i: (i, 0)),
        ),
        compiler_params=pltpu.CompilerParams(
            # batch axis is embarrassingly parallel -> shard across v7x's 2 TCs
            dimension_semantics=("parallel",),
        ),
    )(x_packed, w_packed, b_packed)

    # Unpack (P, 4) -> (B_work, 2) and drop the (at most one) padded row.
    out = out_packed.reshape(B_work, OUT_FEATURES)
    return out if B_work == B else out[:B]


if __name__ == "__main__":
    key = jax.random.PRNGKey(0)
    kx, kw, kb = jax.random.split(key, 3)

    # PyTorch nn.Linear default init: U(-1/sqrt(in), 1/sqrt(in))
    bound = 1.0 / (IN_FEATURES ** 0.5)
    weight = jax.random.uniform(
        kw, (OUT_FEATURES, IN_FEATURES), dtype=jnp.float32,
        minval=-bound, maxval=bound)
    bias = jax.random.uniform(
        kb, (OUT_FEATURES,), dtype=jnp.float32, minval=-bound, maxval=bound)

    # Small-batch check (matches the module's test-harness scale):
    # single full-extent block path.
    B = 8
    x = jax.random.normal(kx, (B, IN_FEATURES), dtype=jnp.float32)
    out = mlp_forward(x, weight, bias)
    jax.block_until_ready(out)
    ref = x @ weight.T + bias
    assert out.shape == (B, OUT_FEATURES)
    assert jnp.allclose(out, ref, atol=1e-5, rtol=1e-5)

    # Larger, odd batch: exercises the 2-step medium path with a ragged
    # (masked) final block and the single-row odd padding.
    B2 = 2051
    x2 = jax.random.normal(kx, (B2, IN_FEATURES), dtype=jnp.float32)
    out2 = mlp_forward(x2, weight, bias)
    jax.block_until_ready(out2)
    ref2 = x2 @ weight.T + bias
    assert out2.shape == (B2, OUT_FEATURES)
    assert jnp.allclose(out2, ref2, atol=1e-5, rtol=1e-5)

    print("KERNEL_OK")
</pallas_src>

<mosaic_0001>
module attributes {stable_mosaic.version = 11 : i64} {
  func.func @linear_kernel(%arg0: i32, %arg1: memref<4x128xf32, #tpu.memory_space<vmem>>, %arg2: memref<128x4xf32, #tpu.memory_space<vmem>>, %arg3: memref<1x4xf32, #tpu.memory_space<vmem>>, %arg4: memref<4x4xf32, #tpu.memory_space<vmem>>) attributes {dimension_semantics = [#tpu.dimension_semantics<parallel>], iteration_bounds = array<i64: 1>, scalar_prefetch = 0 : i64, scratch_operands = 0 : i64, tpu.core_type = #tpu.core_type<tc>, window_params = [{transform_indices = @transform_0, window_bounds = array<i64: 4, 128>}, {pipeline_mode = #tpu.pipeline_mode<synchronous>, transform_indices = @transform_1, window_bounds = array<i64: 128, 4>}, {pipeline_mode = #tpu.pipeline_mode<synchronous>, transform_indices = @transform_2, window_bounds = array<i64: 1, 4>}, {transform_indices = @transform_3, window_bounds = array<i64: 4, 4>}]} {
    %c0 = arith.constant 0 : index
    %c0_0 = arith.constant 0 : index
    %0 = vector.load %arg1[%c0, %c0_0] : memref<4x128xf32, #tpu.memory_space<vmem>>, vector<4x128xf32>
    %c0_1 = arith.constant 0 : index
    %c0_2 = arith.constant 0 : index
    %1 = vector.load %arg2[%c0_1, %c0_2] : memref<128x4xf32, #tpu.memory_space<vmem>>, vector<128x4xf32>
    %cst = arith.constant dense<0.000000e+00> : vector<4x4xf32>
    %2 = tpu.matmul %0, %1, %cst {dimension_numbers = #tpu.dot_dimension_numbers<[1], [0], [0], [1], [0, 0, 1, 1], [], []>} : vector<4x128xf32>, vector<128x4xf32>, vector<4x4xf32> -> vector<4x4xf32>
    %c0_3 = arith.constant 0 : index
    %c0_4 = arith.constant 0 : index
    %3 = vector.load %arg3[%c0_3, %c0_4] : memref<1x4xf32, #tpu.memory_space<vmem>>, vector<1x4xf32>
    %4 = vector.broadcast %3 : vector<1x4xf32> to vector<4x4xf32>
    %5 = arith.addf %2, %4 : vector<4x4xf32>
    %c0_5 = arith.constant 0 : index
    %c0_6 = arith.constant 0 : index
    %6 = vector.load %arg4[%c0_5, %c0_6] : memref<4x4xf32, #tpu.memory_space<vmem>>, vector<4x4xf32>
    tpu.vector_store %arg4[%c0_5, %c0_6], %5 {strides = array<i32>} : memref<4x4xf32, #tpu.memory_space<vmem>>, vector<4x4xf32>,
    return
  }
  func.func @transform_0(%arg0: i32) -> (i32, i32) {
    %c0_i32 = arith.constant 0 : i32
    %c0_i32_0 = arith.constant 0 : i32
    return %arg0, %c0_i32 : i32, i32
  }
  func.func @transform_1(%arg0: i32) -> (i32, i32) {
    %c0_i32 = arith.constant 0 : i32
    %c0_i32_0 = arith.constant 0 : i32
    %c0_i32_1 = arith.constant 0 : i32
    return %c0_i32, %c0_i32_0 : i32, i32
  }
  func.func @transform_2(%arg0: i32) -> (i32, i32) {
    %c0_i32 = arith.constant 0 : i32
    %c0_i32_0 = arith.constant 0 : i32
    %c0_i32_1 = arith.constant 0 : i32
    return %c0_i32, %c0_i32_0 : i32, i32
  }
  func.func @transform_3(%arg0: i32) -> (i32, i32) {
    %c0_i32 = arith.constant 0 : i32
    %c0_i32_0 = arith.constant 0 : i32
    return %arg0, %c0_i32 : i32, i32
  }
}

</mosaic_0001>

<llo_original>
// kernel: tpu_custom_call.1
$region0: #{tpu_custom_call.1}
  #allocation0 [shape = 'u32[]', space=smem, size = 0x4, offset = 0x4, fixed_abs, tag = 'smem constant byte address 0x4 - core index']
  #allocation1 [shape = 'u32[72,128]{1,0:T(1,128)}', space=vmem, size = 0x9000, scoped, tag = 'internal scratch']
  %s0 = inlined_call_operand.vmem [shape: f32[4,128], index: 0, kind: input, shape index: {}]
  %s1 = inlined_call_operand.vmem [shape: f32[128,4], index: 1, kind: input, shape index: {}]
  %s2 = inlined_call_operand.vmem [shape: f32[1,4], index: 2, kind: input, shape index: {}]
  %s3 = inlined_call_operand.hbm [shape: f32[4,4], index: 3, kind: output, shape index: {}]
  %s4 = sld [smem:[#allocation0]]
  $region22: #{tpu_custom_call.1} parent=0
    _
  %s6 = ssub.s32 1, %s4
  %s7 = scalar_select 0, %s6, %s4
  $region1: #{tpu_custom_call.1} parent=0
    #allocation2 [shape = 'u8[2048]{0}', space=vmem, size = 0x800, scoped, tag = 'output window, operand 0, single buffered']
    #allocation3 [shape = 's32[1]{0}', space=sflag, size = 0x4, scoped, tag = 'scoped memory for tpu_custom_call.1']
    %8 = vsyncpa [#allocation3], 0
    // Predicated region
    $region2: #{tpu_custom_call.1} parent=1 // pred_check
      _
    $region3: #{tpu_custom_call.1} parent=1 // pred_check_branch
      %10 = sbr.rel (0) target = $region5
    $region4: #{tpu_custom_call.1} parent=1 // pred_region
      _
    $region5: #{tpu_custom_call.1} parent=1 // pred_fallthru
      _
    // Predicated region
    $region6: #{tpu_custom_call.1} parent=1 // pred_check
      _
    $region7: #{tpu_custom_call.1} parent=1 // pred_check_branch
      %12 = sbr.rel (0) target = $region9
    $region8: #{tpu_custom_call.1} parent=1 // pred_region
      _
    $region9: #{tpu_custom_call.1} parent=1 // pred_fallthru
      _
    // Predicated region
    $region10: #{tpu_custom_call.1} parent=1 // pred_check
      _
    $region11: #{tpu_custom_call.1} parent=1 // pred_check_branch
      %14 = sbr.rel (0) target = $region13
    $region12: #{tpu_custom_call.1} parent=1 // pred_region
      _
    $region13: #{tpu_custom_call.1} parent=1 // pred_fallthru
      _
    %v15 = vld [vmem:[%s0] sm:$0xf]
    %v16 = vld [vmem:[%s1] sm:$0xff]
    %v17 = vld [vmem:[%s1 + $0x8] sm:$0xff]
    %v18 = vld [vmem:[%s1 + $0x10] sm:$0xff]
    %v19 = vld [vmem:[%s1 + $0x18] sm:$0xff]
    %v20 = vld [vmem:[%s1 + $0x20] sm:$0xff]
    %v21 = vld [vmem:[%s1 + $0x28] sm:$0xff]
    %v22 = vld [vmem:[%s1 + $0x30] sm:$0xff]
    %v23 = vld [vmem:[%s1 + $0x38] sm:$0xff]
    %v24 = vld [vmem:[%s1 + $0x40] sm:$0xff]
    %v25 = vld [vmem:[%s1 + $0x48] sm:$0xff]
    %v26 = vld [vmem:[%s1 + $0x50] sm:$0xff]
    %v27 = vld [vmem:[%s1 + $0x58] sm:$0xff]
    %v28 = vld [vmem:[%s1 + $0x60] sm:$0xff]
    %v29 = vld [vmem:[%s1 + $0x68] sm:$0xff]
    %v30 = vld [vmem:[%s1 + $0x70] sm:$0xff]
    %v31 = vld [vmem:[%s1 + $0x78] sm:$0xff]
    %v32 = vld [vmem:[%s2] sm:$0x1]
    %v34 = vperm.slane %v32, 0
    %36 = vmatpush.msra.mxu0 %v31
    %37 = vmatpush.msra.mxu0 %v30
    %38 = vmatpush.msra.mxu0 %v29
    %39 = vmatpush.msra.mxu0 %v28
    %40 = vmatpush.msra.mxu0 %v27
    %41 = vmatpush.msra.mxu0 %v26
    %42 = vmatpush.msra.mxu0 %v25
    %43 = vmatpush.msra.mxu0 %v24
    %44 = vmatpush.msra.mxu0 %v23
    %45 = vmatpush.msra.mxu0 %v22
    %46 = vmatpush.msra.mxu0 %v21
    %47 = vmatpush.msra.mxu0 %v20
    %48 = vmatpush.msra.mxu0 %v19
    %49 = vmatpush.msra.mxu0 %v18
    %50 = vmatpush.msra.mxu0 %v17
    %51 = vmatpush.msra.mxu0 %v16
    %52 = vmatmul.f32.gmra.mxu0 %v15
    %v53 = vpop.f32.mrf.mxu0
    %v54 = vadd.f32 %v34, %v53
    %55 = vdwg.mxu0
    %vm56 = vcmask 27648
    %57 = vst.msk [vmem:[#allocation2] sm:$0xf] %vm56, %v54
    // Predicated region
    $region14: #{tpu_custom_call.1} parent=1 // pred_check
      _
    $region15: #{tpu_custom_call.1} parent=1 // pred_check_branch
      %59 = sbr.rel (0) target = $region17
    $region16: #{tpu_custom_call.1} parent=1 // pred_region
      %61 = vsyncadd [#allocation3], 0
      %s63 = sshll.u32 [#allocation2], 4
      %s64 = int_to_ptr.vmem [resolvable:$true] %s63
      %s65 = sshll.u32 %s3, 4
      %s66 = int_to_ptr.hbm [resolvable:$true] %s65
      %68 = dma.vmem_to_hbm [thread:$0]  %s64, 64, %s66, [#allocation3]
    $region17: #{tpu_custom_call.1} parent=1 // pred_fallthru
      _
    // Predicated region
    $region18: #{tpu_custom_call.1} parent=1 // pred_check
      _
    $region19: #{tpu_custom_call.1} parent=1 // pred_check_branch
      %70 = sbr.rel (0) target = $region21
    $region20: #{tpu_custom_call.1} parent=1 // pred_region
      %72 = dma.done [#allocation3], 64
    $region21: #{tpu_custom_call.1} parent=1 // pred_fallthru
      _
    %73 = vsyncpa [#allocation3], 1

</llo_original>
